<compile_context>
chip_gen: v7x
topology: tpu7x:2x2x1
jax: 0.10.0
libtpu: 0.0.40
codegen_flags: <defaults>
</compile_context>

<pallas_src>
import functools

import jax
import jax.numpy as jnp
from jax.experimental import pallas as pl
from jax.experimental.pallas import tpu as pltpu


def _vmem_capacity_bytes():
    """Physical VMEM per TensorCore (128 MiB v5e/v6e, 64 MiB v7x)."""
    try:
        return int(pltpu.get_tpu_info().vmem_capacity_bytes)
    except Exception:
        return 64 * 1024 * 1024  # conservative fallback (v7x size)


def _soft_ce_rows_kernel(x_ref, y_ref, o_ref, *, n_rows, tile_rows):
    """Per-row  -sum_c( y * log(softmax(x) + 1e-6) )  for one row tile.

    Rows past `n_rows` (ragged last tile) are zeroed in-kernel so the wrapper
    never pads the inputs.
    """
    row0 = pl.program_id(0) * tile_rows
    rid = row0 + jax.lax.broadcasted_iota(jnp.int32, (tile_rows, 1), 0)

    x = x_ref[...].astype(jnp.float32)
    y = y_ref[...].astype(jnp.float32)

    # Numerically stable softmax along the class (lane) axis.
    m = jnp.max(x, axis=-1, keepdims=True)
    e = jnp.exp(x - m)
    s = jnp.sum(e, axis=-1, keepdims=True)
    # Reciprocal hoist: one exact divide per row + VPU broadcast-multiplies
    # instead of a broadcast divide over all C elements.
    sm = e * (1.0 / s)
    # NOTE: +1e-6 inside the log is the reference semantics; keep it exact.
    loss = jnp.sum(y * jnp.log(sm + 1e-6), axis=-1, keepdims=True)  # (TM, 1)

    # jnp.where selects; NaN/garbage from masked (out-of-batch) rows cannot
    # leak into the output.
    o_ref[...] = jnp.where(rid < n_rows, -loss, 0.0)


def _pick_tile_rows(n, c, itemsize, vmem_cap):
    """Largest row tile whose double-buffered inputs fit the VMEM budget."""
    # 2 inputs x 2 pipeline buffers of (tile_rows, C) live in VMEM at once,
    # plus the in-kernel f32 upcasts/temporaries -> keep a generous margin.
    input_budget = int(vmem_cap * 0.35)
    bytes_per_row = 2 * 2 * c * itemsize
    tile_rows = input_budget // max(bytes_per_row, 1)
    tile_rows = (tile_rows // 8) * 8
    tile_rows = max(8, min(1024, tile_rows))
    # Never allocate more rows than the (8-rounded) batch actually has.
    tile_rows = min(tile_rows, ((n + 7) // 8) * 8)
    return max(8, tile_rows)


def soft_cross_entropy(x, y, reduction="mean"):
    """Pallas implementation of soft_CrossEntropy.forward for 2-D (N, C)."""
    assert x.shape == y.shape and x.ndim == 2
    n, c = x.shape
    itemsize = max(jnp.dtype(x.dtype).itemsize, jnp.dtype(y.dtype).itemsize)

    vmem_cap = _vmem_capacity_bytes()
    tile_rows = _pick_tile_rows(n, c, itemsize, vmem_cap)
    num_tiles = pl.cdiv(n, tile_rows)

    # Explicit scoped-VMEM budget: double-buffered inputs + output buffers
    # + margin for the f32 temporaries, capped below physical VMEM.
    vmem_need = 2 * 2 * tile_rows * c * itemsize + 2 * tile_rows * 4 + (8 << 20)
    vmem_limit = int(min(vmem_cap - (8 << 20), max(32 << 20, vmem_need)))

    kernel = functools.partial(
        _soft_ce_rows_kernel, n_rows=n, tile_rows=tile_rows
    )

    per_row = pl.pallas_call(
        kernel,
        out_shape=jax.ShapeDtypeStruct((num_tiles * tile_rows, 1), jnp.float32),
        grid_spec=pltpu.PrefetchScalarGridSpec(
            num_scalar_prefetch=0,
            grid=(num_tiles,),
            in_specs=[
                pl.BlockSpec((tile_rows, c), lambda i: (i, 0)),
                pl.BlockSpec((tile_rows, c), lambda i: (i, 0)),
            ],
            out_specs=pl.BlockSpec((tile_rows, 1), lambda i: (i, 0)),
        ),
        compiler_params=pltpu.CompilerParams(
            dimension_semantics=("parallel",),
            vmem_limit_bytes=vmem_limit,
        ),
    )(x, y)

    if reduction == "mean":
        # Masked rows contributed exactly 0, so a plain sum / true-N is the
        # mean over the real batch.  One tiny XLA reduce in the wrapper keeps
        # the Pallas grid fully parallel (both TensorCores on v7x).
        return jnp.sum(per_row) / jnp.float32(n)
    return per_row[:n, 0]


def _reference(x, y, reduction="mean"):
    sm = jax.nn.softmax(x.astype(jnp.float32), axis=1)
    loss = y.astype(jnp.float32) * jnp.log(sm + 1e-6)
    if reduction == "mean":
        return -jnp.mean(jnp.sum(loss, axis=1), axis=0)
    return -jnp.sum(loss, axis=1)


if __name__ == "__main__":
    key = jax.random.PRNGKey(0)
    k1, k2, k3, k4, k5, k6 = jax.random.split(key, 6)

    # Case 1: tile-aligned batch.
    N, C = 8, 32
    x = jax.random.normal(k1, (N, C), dtype=jnp.float32)
    y = jax.nn.softmax(jax.random.normal(k2, (N, C), dtype=jnp.float32), axis=1)

    out_mean = jax.block_until_ready(soft_cross_entropy(x, y, reduction="mean"))
    ref_mean = _reference(x, y, reduction="mean")
    assert jnp.allclose(out_mean, ref_mean, atol=1e-5, rtol=1e-5), (out_mean, ref_mean)

    out_none = jax.block_until_ready(soft_cross_entropy(x, y, reduction="none"))
    ref_none = _reference(x, y, reduction="none")
    assert jnp.allclose(out_none, ref_none, atol=1e-5, rtol=1e-5)

    # Case 2: ragged batch (exercises the in-kernel row masking, no input pad).
    N2, C2 = 13, 40
    x2 = jax.random.normal(k3, (N2, C2), dtype=jnp.float32)
    y2 = jax.nn.softmax(jax.random.normal(k4, (N2, C2), dtype=jnp.float32), axis=1)

    out_mean2 = jax.block_until_ready(soft_cross_entropy(x2, y2, reduction="mean"))
    ref_mean2 = _reference(x2, y2, reduction="mean")
    assert jnp.allclose(out_mean2, ref_mean2, atol=1e-5, rtol=1e-5), (out_mean2, ref_mean2)

    out_none2 = jax.block_until_ready(soft_cross_entropy(x2, y2, reduction="none"))
    ref_none2 = _reference(x2, y2, reduction="none")
    assert jnp.allclose(out_none2, ref_none2, atol=1e-5, rtol=1e-5)

    # Case 3: bf16 inputs (halved HBM bytes, f32 math in-kernel).
    N3, C3 = 24, 128
    x3 = jax.random.normal(k5, (N3, C3), dtype=jnp.float32).astype(jnp.bfloat16)
    y3 = jax.nn.softmax(
        jax.random.normal(k6, (N3, C3), dtype=jnp.float32), axis=1
    ).astype(jnp.bfloat16)

    out_mean3 = jax.block_until_ready(soft_cross_entropy(x3, y3, reduction="mean"))
    ref_mean3 = _reference(x3, y3, reduction="mean")
    assert jnp.allclose(out_mean3, ref_mean3, atol=2e-3, rtol=2e-3), (out_mean3, ref_mean3)

    print("KERNEL_OK")
</pallas_src>

<mosaic_0001>
module attributes {stable_mosaic.version = 11 : i64} {
  func.func @_soft_ce_rows_kernel(%arg0: i32, %arg1: memref<8x32xf32, #tpu.memory_space<vmem>>, %arg2: memref<8x32xf32, #tpu.memory_space<vmem>>, %arg3: memref<8x1xf32, #tpu.memory_space<vmem>>) attributes {dimension_semantics = [#tpu.dimension_semantics<parallel>], iteration_bounds = array<i64: 1>, scalar_prefetch = 0 : i64, scratch_operands = 0 : i64, tpu.core_type = #tpu.core_type<tc>, window_params = [{transform_indices = @transform_0, window_bounds = array<i64: 8, 32>}, {transform_indices = @transform_1, window_bounds = array<i64: 8, 32>}, {transform_indices = @transform_2, window_bounds = array<i64: 8, 1>}]} {
    %c8_i32 = arith.constant 8 : i32
    %0 = arith.muli %arg0, %c8_i32 : i32
    %1 = tpu.iota {dimensions = array<i32: 0>} : vector<8x1xi32>
    %2 = vector.broadcast %0 : i32 to vector<8x1xi32>
    %3 = arith.addi %2, %1 : vector<8x1xi32>
    %c0 = arith.constant 0 : index
    %c0_0 = arith.constant 0 : index
    %4 = vector.load %arg1[%c0, %c0_0] : memref<8x32xf32, #tpu.memory_space<vmem>>, vector<8x32xf32>
    %c0_1 = arith.constant 0 : index
    %c0_2 = arith.constant 0 : index
    %5 = vector.load %arg2[%c0_1, %c0_2] : memref<8x32xf32, #tpu.memory_space<vmem>>, vector<8x32xf32>
    %cst = arith.constant dense<0xFF800000> : vector<8xf32>
    %6 = vector.multi_reduction <maximumf>, %4, %cst [1] : vector<8x32xf32> to vector<8xf32>
    %7 = vector.shape_cast %6 : vector<8xf32> to vector<8x1xf32>
    %8 = vector.broadcast %7 : vector<8x1xf32> to vector<8x32xf32>
    %9 = arith.subf %4, %8 : vector<8x32xf32>
    %10 = math.exp %9 : vector<8x32xf32>
    %cst_3 = arith.constant dense<0.000000e+00> : vector<8xf32>
    %11 = vector.multi_reduction <add>, %10, %cst_3 [1] : vector<8x32xf32> to vector<8xf32>
    %12 = vector.shape_cast %11 : vector<8xf32> to vector<8x1xf32>
    %cst_4 = arith.constant 1.000000e+00 : f32
    %13 = vector.broadcast %cst_4 : f32 to vector<8x1xf32>
    %14 = arith.divf %13, %12 : vector<8x1xf32>
    %15 = vector.broadcast %14 : vector<8x1xf32> to vector<8x32xf32>
    %16 = arith.mulf %10, %15 : vector<8x32xf32>
    %cst_5 = arith.constant 9.99999997E-7 : f32
    %17 = vector.broadcast %cst_5 : f32 to vector<8x32xf32>
    %18 = arith.addf %16, %17 : vector<8x32xf32>
    %19 = math.log %18 : vector<8x32xf32>
    %20 = arith.mulf %5, %19 : vector<8x32xf32>
    %cst_6 = arith.constant dense<0.000000e+00> : vector<8xf32>
    %21 = vector.multi_reduction <add>, %20, %cst_6 [1] : vector<8x32xf32> to vector<8xf32>
    %22 = vector.shape_cast %21 : vector<8xf32> to vector<8x1xf32>
    %c8_i32_7 = arith.constant 8 : i32
    %23 = vector.broadcast %c8_i32_7 : i32 to vector<8x1xi32>
    %24 = arith.cmpi slt, %3, %23 : vector<8x1xi32>
    %cst_8 = arith.constant 0.000000e+00 : f32
    %25 = vector.broadcast %cst_8 : f32 to vector<8x1xf32>
    %26 = arith.subf %25, %22 : vector<8x1xf32>
    %cst_9 = arith.constant 0.000000e+00 : f32
    %27 = vector.broadcast %cst_9 : f32 to vector<8x1xf32>
    %28 = arith.select %24, %26, %27 : vector<8x1xi1>, vector<8x1xf32>
    %c0_10 = arith.constant 0 : index
    %c0_11 = arith.constant 0 : index
    %29 = vector.load %arg3[%c0_10, %c0_11] : memref<8x1xf32, #tpu.memory_space<vmem>>, vector<8x1xf32>
    tpu.vector_store %arg3[%c0_10, %c0_11], %28 {strides = array<i32>} : memref<8x1xf32, #tpu.memory_space<vmem>>, vector<8x1xf32>,
    return
  }
  func.func @transform_0(%arg0: i32) -> (i32, i32) {
    %c0_i32 = arith.constant 0 : i32
    %c0_i32_0 = arith.constant 0 : i32
    return %arg0, %c0_i32 : i32, i32
  }
  func.func @transform_1(%arg0: i32) -> (i32, i32) {
    %c0_i32 = arith.constant 0 : i32
    %c0_i32_0 = arith.constant 0 : i32
    return %arg0, %c0_i32 : i32, i32
  }
  func.func @transform_2(%arg0: i32) -> (i32, i32) {
    %c0_i32 = arith.constant 0 : i32
    %c0_i32_0 = arith.constant 0 : i32
    return %arg0, %c0_i32 : i32, i32
  }
}

</mosaic_0001>

<llo_original>
// kernel: tpu_custom_call.1
$region0: #{tpu_custom_call.1}
  #allocation0 [shape = 'u32[]', space=smem, size = 0x4, offset = 0x4, fixed_abs, tag = 'smem constant byte address 0x4 - core index']
  #allocation1 [shape = 'u32[144,128]{1,0:T(1,128)}', space=vmem, size = 0x12000, scoped, tag = 'internal scratch']
  %s0 = inlined_call_operand.hbm [shape: f32[8,32], index: 0, kind: input, shape index: {}]
  %s1 = inlined_call_operand.hbm [shape: f32[8,32], index: 1, kind: input, shape index: {}]
  %s2 = inlined_call_operand.vmem [shape: f32[8,1], index: 2, kind: output, shape index: {}]
  %s3 = sld [smem:[#allocation0]]
  $region26: #{tpu_custom_call.1} parent=0
    _
  %s5 = ssub.s32 1, %s3
  %s6 = scalar_select 0, %s5, %s3
  $region1: #{tpu_custom_call.1} parent=0
    #allocation2 [shape = 'u8[4096]{0}', space=vmem, size = 0x1000, scoped, tag = 'input window, operand 0, single buffered']
    #allocation3 [shape = 's32[1]{0}', space=sflag, size = 0x4, scoped, tag = 'scoped memory for tpu_custom_call.1']
    #allocation4 [shape = 'u8[4096]{0}', space=vmem, size = 0x1000, scoped, tag = 'input window, operand 1, single buffered']
    #allocation5 [shape = 's32[1]{0}', space=sflag, size = 0x4, scoped, tag = 'scoped memory for tpu_custom_call.1']
    %7 = vsyncpa [#allocation3], 0
    %8 = vsyncpa [#allocation5], 0
    // Predicated region
    $region2: #{tpu_custom_call.1} parent=1 // pred_check
      _
    $region3: #{tpu_custom_call.1} parent=1 // pred_check_branch
      %10 = sbr.rel (0) target = $region5
    $region4: #{tpu_custom_call.1} parent=1 // pred_region
      %s12 = ssub.s32 128, 128
      %13 = vsyncadd [#allocation3], %s12
      %s15 = sshll.u32 [#allocation2], 4
      %s16 = int_to_ptr.vmem [resolvable:$true] %s15
      %18 = dma.hbm_to_vmem [thread:$0]  %s0, 128, %s16, [#allocation3]
    $region5: #{tpu_custom_call.1} parent=1 // pred_fallthru
      _
    // Predicated region
    $region6: #{tpu_custom_call.1} parent=1 // pred_check
      _
    $region7: #{tpu_custom_call.1} parent=1 // pred_check_branch
      %20 = sbr.rel (0) target = $region9
    $region8: #{tpu_custom_call.1} parent=1 // pred_region
      %s22 = ssub.s32 128, 128
      %23 = vsyncadd [#allocation5], %s22
      %s25 = sshll.u32 [#allocation4], 4
      %s26 = int_to_ptr.vmem [resolvable:$true] %s25
      %28 = dma.hbm_to_vmem [thread:$0]  %s1, 128, %s26, [#allocation5]
    $region9: #{tpu_custom_call.1} parent=1 // pred_fallthru
      _
    // Predicated region
    $region10: #{tpu_custom_call.1} parent=1 // pred_check
      _
    $region11: #{tpu_custom_call.1} parent=1 // pred_check_branch
      %30 = sbr.rel (0) target = $region13
    $region12: #{tpu_custom_call.1} parent=1 // pred_region
      %31 = dma.done [#allocation3], 128
    $region13: #{tpu_custom_call.1} parent=1 // pred_fallthru
      _
    // Predicated region
    $region14: #{tpu_custom_call.1} parent=1 // pred_check
      _
    $region15: #{tpu_custom_call.1} parent=1 // pred_check_branch
      %33 = sbr.rel (0) target = $region17
    $region16: #{tpu_custom_call.1} parent=1 // pred_region
      %34 = dma.done [#allocation5], 128
    $region17: #{tpu_custom_call.1} parent=1 // pred_fallthru
      _
    %s35 = smul.u32 0, 8
    %v36 = vlaneseq
    %v37 = vshrl.u32 %v36, 7
    %v38 = vstv %s35
    %v39 = vadd.s32 %v38, %v37
    %v40 = vld [vmem:[#allocation2] sm:$0xff]
    %v41 = vld [vmem:[#allocation4] sm:$0xff]
    %vm42 = vcmask 261120
    %v43 = vsel %vm42, %v40, -inf
    %44 = vmax.xlane.f32.xlu0 %v43
    %v45 = vpop.xlane.xlu0 %44
    %v46 = vsub.f32 %v40, %v45
    %v47 = vmul.f32 %v46, 1.442695
    %v48 = vpow.pop %v47
    %v49 = vsel %vm42, %v48, 0.0
    %50 = vadd.xlane.f32.xlu0 %v49
    %v51 = vpop.xlane.xlu0 %50
    %v52 = vrcp.pop %v51
    %v53 = vmul.f32 1.0, %v52
    %v54 = vmul.f32 %v48, %v53
    %v55 = vadd.f32 %v54, 1e-06
    %v56 = vlog2.pop %v55
    %v57 = vmul.f32 %v56, 0.6931472
    %v58 = vmul.f32 %v41, %v57
    %v59 = vsel %vm42, %v58, 0.0
    %60 = vadd.xlane.f32.xlu0 %v59
    %v61 = vpop.xlane.xlu0 %60
    %vm62 = vcmp.lt.s32.totalorder %v39, 8
    %v63 = vsub.f32 0.0, %v61
    %v64 = vsel %vm62, %v63, 0.0
    %vm65 = vcmask 7168
    %66 = vst.msk [vmem:[%s2] sm:$0xff] %vm65, %v64
    // Predicated region
    $region18: #{tpu_custom_call.1} parent=1 // pred_check
      _
    $region19: #{tpu_custom_call.1} parent=1 // pred_check_branch
      %68 = sbr.rel (0) target = $region21
    $region20: #{tpu_custom_call.1} parent=1 // pred_region
      _
    $region21: #{tpu_custom_call.1} parent=1 // pred_fallthru
      _
    // Predicated region
    $region22: #{tpu_custom_call.1} parent=1 // pred_check
      _
    $region23: #{tpu_custom_call.1} parent=1 // pred_check_branch
      %70 = sbr.rel (0) target = $region25
    $region24: #{tpu_custom_call.1} parent=1 // pred_region
      _
    $region25: #{tpu_custom_call.1} parent=1 // pred_fallthru
      _
    %71 = vsyncpa [#allocation3], 1
    %72 = vsyncpa [#allocation5], 1

</llo_original>
